<compile_context>
chip_gen: v7x
topology: tpu7x:2x2x1
jax: 0.10.0
libtpu: 0.0.40
codegen_flags: <defaults>
</compile_context>

<pallas_src>
import functools

import jax
import jax.numpy as jnp
from jax.experimental import pallas as pl
from jax.experimental.pallas import tpu as pltpu


def _round_up(a, m):
    return ((a + m - 1) // m) * m


def _ffn_kernel(x_ref, w1_ref, b1_ref, w2_ref, b2_ref, o_ref):
    # x_ref:  (TR, C) tile of tokens
    # w1_ref: (C, C) conv1 weight (transposed), b1_ref: (1, C)
    # w2_ref: (C, C) conv2 weight (transposed), b2_ref: (1, C)
    x = x_ref[...]                                            # loaded once, reused
    h = jnp.dot(x, w1_ref[...],
                preferred_element_type=jnp.float32) + b1_ref[...]
    h = jnp.maximum(h, 0.0)                                   # ReLU (dropout1 = id)
    y = jnp.dot(h.astype(w2_ref.dtype), w2_ref[...],
                preferred_element_type=jnp.float32) + b2_ref[...]
    # dropout2 = identity; residual add
    o_ref[...] = (y + x).astype(o_ref.dtype)


@functools.partial(jax.jit, static_argnames=("tile_r",))
def pointwise_ffn(x, w1, b1, w2, b2, *, tile_r=1024):
    """x: (N, L, C).  w1, w2: (C_out, C_in) PyTorch Conv1d(k=1) weights (squeezed).
    Returns (N, L, C) = x + conv2(relu(conv1(x^T)))^T."""
    N, L, C = x.shape
    R = N * L
    dtype_bytes = jnp.dtype(x.dtype).itemsize

    # --- row tile selection (no HBM padding; grid handles the ragged tail) ---
    if R > 256:
        # multiple of 256; keep grid >= 2 when R allows it (v7x megacore)
        tile = min(tile_r, max(256, _round_up(pl.cdiv(R, 2), 256)))
    else:
        tile = _round_up(R, 8)          # tiny input: one block, %8-aligned

    # --- VMEM budget: x + out double-buffered, resident W1/W2/b, f32 h/y values.
    #     Keep under ~24 MiB so the 32 MiB scoped default holds everywhere
    #     (v7x has only 64 MiB physical VMEM).
    def _budget(t):
        return (2 * t * C * dtype_bytes          # x (double-buffered)
                + 2 * t * C * dtype_bytes        # out (double-buffered)
                + 2 * 2 * C * C * dtype_bytes    # W1, W2
                + 2 * 2 * C * dtype_bytes        # b1, b2
                + 2 * t * C * 4)                 # f32 intermediates
    while tile > 256 and _budget(tile) > 24 * 1024 * 1024:
        tile -= 256

    grid = (pl.cdiv(R, tile),)          # last block may be partial; OOB writes dropped

    x2d = x.reshape(R, C)               # view only — no extra HBM pass
    # conv1d k=1: y[.., o] = sum_i x[.., i] * W[o, i] + b[o]  ->  x @ W.T + b
    w1t = jnp.asarray(w1).T.astype(x.dtype)      # (C_in, C_out)
    w2t = jnp.asarray(w2).T.astype(x.dtype)
    b1r = jnp.asarray(b1).reshape(1, C).astype(x.dtype)
    b2r = jnp.asarray(b2).reshape(1, C).astype(x.dtype)

    cost = pl.CostEstimate(
        flops=4 * R * C * C,                                   # two (R,C)x(C,C) matmuls
        transcendentals=0,
        bytes_accessed=2 * R * C * dtype_bytes + 2 * C * C * dtype_bytes,
    )

    out2d = pl.pallas_call(
        _ffn_kernel,
        out_shape=jax.ShapeDtypeStruct((R, C), x.dtype),
        grid_spec=pltpu.PrefetchScalarGridSpec(
            num_scalar_prefetch=0,
            grid=grid,
            in_specs=[
                pl.BlockSpec((tile, C), lambda i: (i, 0)),   # x row tile
                pl.BlockSpec((C, C), lambda i: (0, 0)),      # W1^T (resident)
                pl.BlockSpec((1, C), lambda i: (0, 0)),      # b1
                pl.BlockSpec((C, C), lambda i: (0, 0)),      # W2^T (resident)
                pl.BlockSpec((1, C), lambda i: (0, 0)),      # b2
            ],
            out_specs=pl.BlockSpec((tile, C), lambda i: (i, 0)),
        ),
        compiler_params=pltpu.CompilerParams(
            dimension_semantics=("parallel",),               # megacore-shardable rows
            vmem_limit_bytes=32 * 1024 * 1024,
        ),
        cost_estimate=cost,
    )(x2d, w1t, b1r, w2t, b2r)

    return out2d.reshape(N, L, C)


def _reference(x, w1, b1, w2, b2):
    # pure-JAX reference of the PyTorch forward (eval mode)
    h = jnp.einsum("nlc,oc->nlo", x, w1) + b1
    h = jnp.maximum(h, 0.0)
    y = jnp.einsum("nlc,oc->nlo", h, w2) + b2
    return y + x


if __name__ == "__main__":
    N, L, C = 2, 8, 32  # batch, seq, hidden_units

    key = jax.random.PRNGKey(0)
    kx, k1, k2, k3, k4 = jax.random.split(key, 5)

    x = jax.random.normal(kx, (N, L, C), dtype=jnp.float32)
    # deterministic synthetic params (Conv1d(C, C, kernel_size=1) -> weight (C, C, 1))
    w1 = jax.random.normal(k1, (C, C), dtype=jnp.float32) * (1.0 / jnp.sqrt(C))
    b1 = jax.random.normal(k2, (C,), dtype=jnp.float32) * 0.01
    w2 = jax.random.normal(k3, (C, C), dtype=jnp.float32) * (1.0 / jnp.sqrt(C))
    b2 = jax.random.normal(k4, (C,), dtype=jnp.float32) * 0.01

    out = pointwise_ffn(x, w1, b1, w2, b2)
    out = jax.block_until_ready(out)

    ref = _reference(x, w1, b1, w2, b2)
    assert out.shape == (N, L, C)
    assert jnp.allclose(out, ref, atol=1e-4, rtol=1e-4)

    print("KERNEL_OK")
</pallas_src>

<mosaic_0001>
module attributes {stable_mosaic.version = 11 : i64} {
  func.func @_ffn_kernel(%arg0: i32, %arg1: memref<16x32xf32, #tpu.memory_space<vmem>>, %arg2: memref<32x32xf32, #tpu.memory_space<vmem>>, %arg3: memref<1x32xf32, #tpu.memory_space<vmem>>, %arg4: memref<32x32xf32, #tpu.memory_space<vmem>>, %arg5: memref<1x32xf32, #tpu.memory_space<vmem>>, %arg6: memref<16x32xf32, #tpu.memory_space<vmem>>) attributes {dimension_semantics = [#tpu.dimension_semantics<parallel>], iteration_bounds = array<i64: 1>, scalar_prefetch = 0 : i64, scratch_operands = 0 : i64, tpu.core_type = #tpu.core_type<tc>, window_params = [{transform_indices = @transform_0, window_bounds = array<i64: 16, 32>}, {pipeline_mode = #tpu.pipeline_mode<synchronous>, transform_indices = @transform_1, window_bounds = array<i64: 32, 32>}, {pipeline_mode = #tpu.pipeline_mode<synchronous>, transform_indices = @transform_2, window_bounds = array<i64: 1, 32>}, {pipeline_mode = #tpu.pipeline_mode<synchronous>, transform_indices = @transform_3, window_bounds = array<i64: 32, 32>}, {pipeline_mode = #tpu.pipeline_mode<synchronous>, transform_indices = @transform_4, window_bounds = array<i64: 1, 32>}, {transform_indices = @transform_5, window_bounds = array<i64: 16, 32>}]} {
    %c0 = arith.constant 0 : index
    %c0_0 = arith.constant 0 : index
    %0 = vector.load %arg1[%c0, %c0_0] : memref<16x32xf32, #tpu.memory_space<vmem>>, vector<16x32xf32>
    %c0_1 = arith.constant 0 : index
    %c0_2 = arith.constant 0 : index
    %1 = vector.load %arg2[%c0_1, %c0_2] : memref<32x32xf32, #tpu.memory_space<vmem>>, vector<32x32xf32>
    %cst = arith.constant dense<0.000000e+00> : vector<16x32xf32>
    %2 = tpu.matmul %0, %1, %cst {dimension_numbers = #tpu.dot_dimension_numbers<[1], [0], [0], [1], [0, 0, 1, 1], [], []>} : vector<16x32xf32>, vector<32x32xf32>, vector<16x32xf32> -> vector<16x32xf32>
    %c0_3 = arith.constant 0 : index
    %c0_4 = arith.constant 0 : index
    %3 = vector.load %arg3[%c0_3, %c0_4] : memref<1x32xf32, #tpu.memory_space<vmem>>, vector<1x32xf32>
    %4 = vector.broadcast %3 : vector<1x32xf32> to vector<16x32xf32>
    %5 = arith.addf %2, %4 : vector<16x32xf32>
    %cst_5 = arith.constant 0.000000e+00 : f32
    %6 = vector.broadcast %cst_5 : f32 to vector<16x32xf32>
    %7 = arith.maximumf %5, %6 : vector<16x32xf32>
    %c0_6 = arith.constant 0 : index
    %c0_7 = arith.constant 0 : index
    %8 = vector.load %arg4[%c0_6, %c0_7] : memref<32x32xf32, #tpu.memory_space<vmem>>, vector<32x32xf32>
    %cst_8 = arith.constant dense<0.000000e+00> : vector<16x32xf32>
    %9 = tpu.matmul %7, %8, %cst_8 {dimension_numbers = #tpu.dot_dimension_numbers<[1], [0], [0], [1], [0, 0, 1, 1], [], []>} : vector<16x32xf32>, vector<32x32xf32>, vector<16x32xf32> -> vector<16x32xf32>
    %c0_9 = arith.constant 0 : index
    %c0_10 = arith.constant 0 : index
    %10 = vector.load %arg5[%c0_9, %c0_10] : memref<1x32xf32, #tpu.memory_space<vmem>>, vector<1x32xf32>
    %11 = vector.broadcast %10 : vector<1x32xf32> to vector<16x32xf32>
    %12 = arith.addf %9, %11 : vector<16x32xf32>
    %13 = arith.addf %12, %0 : vector<16x32xf32>
    %c0_11 = arith.constant 0 : index
    %c0_12 = arith.constant 0 : index
    %14 = vector.load %arg6[%c0_11, %c0_12] : memref<16x32xf32, #tpu.memory_space<vmem>>, vector<16x32xf32>
    tpu.vector_store %arg6[%c0_11, %c0_12], %13 {strides = array<i32>} : memref<16x32xf32, #tpu.memory_space<vmem>>, vector<16x32xf32>,
    return
  }
  func.func @transform_0(%arg0: i32) -> (i32, i32) {
    %c0_i32 = arith.constant 0 : i32
    %c0_i32_0 = arith.constant 0 : i32
    return %arg0, %c0_i32 : i32, i32
  }
  func.func @transform_1(%arg0: i32) -> (i32, i32) {
    %c0_i32 = arith.constant 0 : i32
    %c0_i32_0 = arith.constant 0 : i32
    %c0_i32_1 = arith.constant 0 : i32
    return %c0_i32, %c0_i32_0 : i32, i32
  }
  func.func @transform_2(%arg0: i32) -> (i32, i32) {
    %c0_i32 = arith.constant 0 : i32
    %c0_i32_0 = arith.constant 0 : i32
    %c0_i32_1 = arith.constant 0 : i32
    return %c0_i32, %c0_i32_0 : i32, i32
  }
  func.func @transform_3(%arg0: i32) -> (i32, i32) {
    %c0_i32 = arith.constant 0 : i32
    %c0_i32_0 = arith.constant 0 : i32
    %c0_i32_1 = arith.constant 0 : i32
    return %c0_i32, %c0_i32_0 : i32, i32
  }
  func.func @transform_4(%arg0: i32) -> (i32, i32) {
    %c0_i32 = arith.constant 0 : i32
    %c0_i32_0 = arith.constant 0 : i32
    %c0_i32_1 = arith.constant 0 : i32
    return %c0_i32, %c0_i32_0 : i32, i32
  }
  func.func @transform_5(%arg0: i32) -> (i32, i32) {
    %c0_i32 = arith.constant 0 : i32
    %c0_i32_0 = arith.constant 0 : i32
    return %arg0, %c0_i32 : i32, i32
  }
}

</mosaic_0001>

<llo_original>
// kernel: pointwise_ffn.1
$region0: #{pointwise_ffn.1}
  #allocation0 [shape = 'u32[]', space=smem, size = 0x4, offset = 0x4, fixed_abs, tag = 'smem constant byte address 0x4 - core index']
  #allocation1 [shape = 'u32[144,128]{1,0:T(1,128)}', space=vmem, size = 0x12000, scoped, tag = 'internal scratch']
  %s0 = inlined_call_operand.vmem [shape: f32[16,32], index: 0, kind: input, shape index: {}]
  %s1 = inlined_call_operand.vmem [shape: f32[32,32], index: 1, kind: input, shape index: {}]
  %s2 = inlined_call_operand.vmem [shape: f32[1,32], index: 2, kind: input, shape index: {}]
  %s3 = inlined_call_operand.vmem [shape: f32[32,32], index: 3, kind: input, shape index: {}]
  %s4 = inlined_call_operand.vmem [shape: f32[1,32], index: 4, kind: input, shape index: {}]
  %s5 = inlined_call_operand.hbm [shape: f32[16,32], index: 5, kind: output, shape index: {}]
  %s6 = sld [smem:[#allocation0]]
  $region30: #{pointwise_ffn.1} parent=0
    _
  %s8 = ssub.s32 1, %s6
  %s9 = scalar_select 0, %s8, %s6
  $region1: #{pointwise_ffn.1} parent=0
    #allocation2 [shape = 'u8[8192]{0}', space=vmem, size = 0x2000, scoped, tag = 'output window, operand 0, single buffered']
    #allocation3 [shape = 's32[1]{0}', space=sflag, size = 0x4, scoped, tag = 'scoped memory for pointwise_ffn.1']
    %10 = vsyncpa [#allocation3], 0
    // Predicated region
    $region2: #{pointwise_ffn.1} parent=1 // pred_check
      _
    $region3: #{pointwise_ffn.1} parent=1 // pred_check_branch
      %12 = sbr.rel (0) target = $region5
    $region4: #{pointwise_ffn.1} parent=1 // pred_region
      _
    $region5: #{pointwise_ffn.1} parent=1 // pred_fallthru
      _
    // Predicated region
    $region6: #{pointwise_ffn.1} parent=1 // pred_check
      _
    $region7: #{pointwise_ffn.1} parent=1 // pred_check_branch
      %14 = sbr.rel (0) target = $region9
    $region8: #{pointwise_ffn.1} parent=1 // pred_region
      _
    $region9: #{pointwise_ffn.1} parent=1 // pred_fallthru
      _
    // Predicated region
    $region10: #{pointwise_ffn.1} parent=1 // pred_check
      _
    $region11: #{pointwise_ffn.1} parent=1 // pred_check_branch
      %16 = sbr.rel (0) target = $region13
    $region12: #{pointwise_ffn.1} parent=1 // pred_region
      _
    $region13: #{pointwise_ffn.1} parent=1 // pred_fallthru
      _
    // Predicated region
    $region14: #{pointwise_ffn.1} parent=1 // pred_check
      _
    $region15: #{pointwise_ffn.1} parent=1 // pred_check_branch
      %18 = sbr.rel (0) target = $region17
    $region16: #{pointwise_ffn.1} parent=1 // pred_region
      _
    $region17: #{pointwise_ffn.1} parent=1 // pred_fallthru
      _
    // Predicated region
    $region18: #{pointwise_ffn.1} parent=1 // pred_check
      _
    $region19: #{pointwise_ffn.1} parent=1 // pred_check_branch
      %20 = sbr.rel (0) target = $region21
    $region20: #{pointwise_ffn.1} parent=1 // pred_region
      _
    $region21: #{pointwise_ffn.1} parent=1 // pred_fallthru
      _
    %v21 = vld [vmem:[%s0] sm:$0xff]
    %v22 = vld [vmem:[%s0 + $0x8] sm:$0xff]
    %v23 = vld [vmem:[%s1] sm:$0xff]
    %v24 = vld [vmem:[%s1 + $0x8] sm:$0xff]
    %v25 = vld [vmem:[%s1 + $0x10] sm:$0xff]
    %v26 = vld [vmem:[%s1 + $0x18] sm:$0xff]
    %v27 = vld [vmem:[%s2] sm:$0x1]
    %v29 = vlaneseq
    %v30 = vshrl.u32 %v29, 7
    %v31 = vsub.s32 0, %v30
    %v32 = vrot.slane %v27, %v31
    %vm34 = vcmask 261120
    %v36 = vsel %vm34, %v21, 0
    %v39 = vsel %vm34, %v22, 0
    %41 = vmatprep.subr.mxu0 0.0
    %42 = vmatpush1.msra.mxu0 %v23
    %43 = vmatprep.subr.mxu0 0.0
    %44 = vmatpush1.msra.mxu0 %v24
    %45 = vmatprep.subr.mxu0 0.0
    %46 = vmatpush1.msra.mxu0 %v25
    %47 = vmatprep.subr.mxu0 0.0
    %48 = vmatpush1.msra.mxu0 %v26
    %49 = vmatprep.subr.mxu0 0.0
    %50 = vmatpush1.msra.mxu0 0.0
    %51 = vmatprep.subr.mxu0 0.0
    %52 = vmatpush1.msra.mxu0 0.0
    %53 = vmatprep.subr.mxu0 0.0
    %54 = vmatpush1.msra.mxu0 0.0
    %55 = vmatprep.subr.mxu0 0.0
    %56 = vmatpush1.msra.mxu0 0.0
    %57 = vmatprep.subr.mxu0 0.0
    %58 = vmatpush1.msra.mxu0 0.0
    %59 = vmatprep.subr.mxu0 0.0
    %60 = vmatpush1.msra.mxu0 0.0
    %61 = vmatprep.subr.mxu0 0.0
    %62 = vmatpush1.msra.mxu0 0.0
    %63 = vmatprep.subr.mxu0 0.0
    %64 = vmatpush1.msra.mxu0 0.0
    %65 = vmatprep.subr.mxu0 0.0
    %66 = vmatpush1.msra.mxu0 0.0
    %67 = vmatprep.subr.mxu0 0.0
    %68 = vmatpush1.msra.mxu0 0.0
    %69 = vmatprep.subr.mxu0 0.0
    %70 = vmatpush1.msra.mxu0 0.0
    %71 = vmatprep.subr.mxu0 0.0
    %72 = vmatpush1.msra.mxu0 0.0
    %73 = vmatprep.subr.mxu0 0.0
    %74 = vmatpush1.msra.mxu0 0.0
    %75 = vmatprep.subr.mxu0 0.0
    %76 = vmatpush1.msra.mxu0 0.0
    %77 = vmatprep.subr.mxu0 0.0
    %78 = vmatpush1.msra.mxu0 0.0
    %79 = vmatprep.subr.mxu0 0.0
    %80 = vmatpush1.msra.mxu0 0.0
    %81 = vmatprep.subr.mxu0 0.0
    %82 = vmatpush1.msra.mxu0 0.0
    %83 = vmatprep.subr.mxu0 0.0
    %84 = vmatpush1.msra.mxu0 0.0
    %85 = vmatprep.subr.mxu0 0.0
    %86 = vmatpush1.msra.mxu0 0.0
    %87 = vmatprep.subr.mxu0 0.0
    %88 = vmatpush1.msra.mxu0 0.0
    %89 = vmatprep.subr.mxu0 0.0
    %90 = vmatpush1.msra.mxu0 0.0
    %91 = vmatprep.subr.mxu0 0.0
    %92 = vmatpush1.msra.mxu0 0.0
    %93 = vmatprep.subr.mxu0 0.0
    %94 = vmatpush1.msra.mxu0 0.0
    %95 = vmatprep.subr.mxu0 0.0
    %96 = vmatpush1.msra.mxu0 0.0
    %97 = vmatprep.subr.mxu0 0.0
    %98 = vmatpush1.msra.mxu0 0.0
    %99 = vmatprep.subr.mxu0 0.0
    %100 = vmatpush1.msra.mxu0 0.0
    %101 = vmatprep.subr.mxu0 0.0
    %102 = vmatpush1.msra.mxu0 0.0
    %103 = vmatprep.subr.mxu0 0.0
    %104 = vmatpush1.msra.mxu0 0.0
    %105 = vmatprep.mubr.f32.mxu0 0.0
    %106 = vmatmul.mubr.f32.gmra.mrb[0].mxu0 %v36
    %v107 = vpop.f32.mrb[0].mxu0
    %v108 = vadd.f32 %v32, %v107
    %v109 = vpop.f32.mrb[0].mxu0
    %110 = vmatprep.mubr.f32.mxu0 0.0
    %111 = vmatmul.mubr.f32.gmra.mrb[0].mxu0 %v39
    %v112 = vpop.f32.mrb[0].mxu0
    %v113 = vadd.f32 %v32, %v112
    %v114 = vpop.f32.mrb[0].mxu0
    %115 = vdwg.mxu0
    %v116 = vmax.f32 %v108, 0.0
    %v117 = vmax.f32 %v113, 0.0
    %v118 = vld [vmem:[%s3] sm:$0xff]
    %v119 = vld [vmem:[%s3 + $0x8] sm:$0xff]
    %v120 = vld [vmem:[%s3 + $0x10] sm:$0xff]
    %v121 = vld [vmem:[%s3 + $0x18] sm:$0xff]
    %v122 = vld [vmem:[%s4] sm:$0x1]
    %v124 = vlaneseq
    %v125 = vshrl.u32 %v124, 7
    %v126 = vsub.s32 0, %v125
    %v127 = vrot.slane %v122, %v126
    %v130 = vsel %vm34, %v116, 0
    %v133 = vsel %vm34, %v117, 0
    %135 = vmatprep.subr.mxu0 0.0
    %136 = vmatpush1.msra.mxu0 %v118
    %137 = vmatprep.subr.mxu0 0.0
    %138 = vmatpush1.msra.mxu0 %v119
    %139 = vmatprep.subr.mxu0 0.0
    %140 = vmatpush1.msra.mxu0 %v120
    %141 = vmatprep.subr.mxu0 0.0
    %142 = vmatpush1.msra.mxu0 %v121
    %143 = vmatprep.subr.mxu0 0.0
    %144 = vmatpush1.msra.mxu0 0.0
    %145 = vmatprep.subr.mxu0 0.0
    %146 = vmatpush1.msra.mxu0 0.0
    %147 = vmatprep.subr.mxu0 0.0
    %148 = vmatpush1.msra.mxu0 0.0
    %149 = vmatprep.subr.mxu0 0.0
    %150 = vmatpush1.msra.mxu0 0.0
    %151 = vmatprep.subr.mxu0 0.0
    %152 = vmatpush1.msra.mxu0 0.0
    %153 = vmatprep.subr.mxu0 0.0
    %154 = vmatpush1.msra.mxu0 0.0
    %155 = vmatprep.subr.mxu0 0.0
    %156 = vmatpush1.msra.mxu0 0.0
    %157 = vmatprep.subr.mxu0 0.0
    %158 = vmatpush1.msra.mxu0 0.0
    %159 = vmatprep.subr.mxu0 0.0
    %160 = vmatpush1.msra.mxu0 0.0
    %161 = vmatprep.subr.mxu0 0.0
    %162 = vmatpush1.msra.mxu0 0.0
    %163 = vmatprep.subr.mxu0 0.0
    %164 = vmatpush1.msra.mxu0 0.0
    %165 = vmatprep.subr.mxu0 0.0
    %166 = vmatpush1.msra.mxu0 0.0
    %167 = vmatprep.subr.mxu0 0.0
    %168 = vmatpush1.msra.mxu0 0.0
    %169 = vmatprep.subr.mxu0 0.0
    %170 = vmatpush1.msra.mxu0 0.0
    %171 = vmatprep.subr.mxu0 0.0
    %172 = vmatpush1.msra.mxu0 0.0
    %173 = vmatprep.subr.mxu0 0.0
    %174 = vmatpush1.msra.mxu0 0.0
    %175 = vmatprep.subr.mxu0 0.0
    %176 = vmatpush1.msra.mxu0 0.0
    %177 = vmatprep.subr.mxu0 0.0
    %178 = vmatpush1.msra.mxu0 0.0
    %179 = vmatprep.subr.mxu0 0.0
    %180 = vmatpush1.msra.mxu0 0.0
    %181 = vmatprep.subr.mxu0 0.0
    %182 = vmatpush1.msra.mxu0 0.0
    %183 = vmatprep.subr.mxu0 0.0
    %184 = vmatpush1.msra.mxu0 0.0
    %185 = vmatprep.subr.mxu0 0.0
    %186 = vmatpush1.msra.mxu0 0.0
    %187 = vmatprep.subr.mxu0 0.0
    %188 = vmatpush1.msra.mxu0 0.0
    %189 = vmatprep.subr.mxu0 0.0
    %190 = vmatpush1.msra.mxu0 0.0
    %191 = vmatprep.subr.mxu0 0.0
    %192 = vmatpush1.msra.mxu0 0.0
    %193 = vmatprep.subr.mxu0 0.0
    %194 = vmatpush1.msra.mxu0 0.0
    %195 = vmatprep.subr.mxu0 0.0
    %196 = vmatpush1.msra.mxu0 0.0
    %197 = vmatprep.subr.mxu0 0.0
    %198 = vmatpush1.msra.mxu0 0.0
    %199 = vmatprep.mubr.f32.mxu0 0.0
    %200 = vmatmul.mubr.f32.gmra.mrb[0].mxu0 %v130
    %v201 = vpop.f32.mrb[0].mxu0
    %v202 = vadd.f32 %v127, %v201
    %v203 = vpop.f32.mrb[0].mxu0
    %204 = vmatprep.mubr.f32.mxu0 0.0
    %205 = vmatmul.mubr.f32.gmra.mrb[0].mxu0 %v133
    %v206 = vpop.f32.mrb[0].mxu0
    %v207 = vadd.f32 %v127, %v206
    %v208 = vpop.f32.mrb[0].mxu0
    %209 = vdwg.mxu0
    %v210 = vadd.f32 %v202, %v21
    %v211 = vadd.f32 %v207, %v22
    %212 = vst.msk [vmem:[#allocation2] sm:$0xff] %vm34, %v210
    %213 = vst.msk [vmem:[#allocation2 + $0x8] sm:$0xff] %vm34, %v211
    // Predicated region
    $region22: #{pointwise_ffn.1} parent=1 // pred_check
      _
    $region23: #{pointwise_ffn.1} parent=1 // pred_check_branch
      %215 = sbr.rel (0) target = $region25
    $region24: #{pointwise_ffn.1} parent=1 // pred_region
      %s217 = ssub.s32 256, 256
      %218 = vsyncadd [#allocation3], %s217
      %s219 = sshll.u32 [#allocation2], 4
      %s220 = int_to_ptr.vmem [resolvable:$true] %s219
      %225 = dma.vmem_to_hbm [thread:$0]  %s220, 256, %s5, [#allocation3], 128, 128, 8
    $region25: #{pointwise_ffn.1} parent=1 // pred_fallthru
      _
    // Predicated region
    $region26: #{pointwise_ffn.1} parent=1 // pred_check
      _
    $region27: #{pointwise_ffn.1} parent=1 // pred_check_branch
      %227 = sbr.rel (0) target = $region29
    $region28: #{pointwise_ffn.1} parent=1 // pred_region
      %228 = dma.done [#allocation3], 256
    $region29: #{pointwise_ffn.1} parent=1 // pred_fallthru
      _
    %229 = vsyncpa [#allocation3], 1

</llo_original>
